<compile_context>
chip_gen: v7x
topology: tpu7x:2x2x1
jax: 0.10.0
libtpu: 0.0.40
codegen_flags: <defaults>
</compile_context>

<pallas_src>
import math
import numpy as np
import jax
import jax.numpy as jnp
from jax.experimental import pallas as pl
from jax.experimental.pallas import tpu as pltpu


# ----------------------------- beta schedule (glue, numpy) -----------------------------
def make_beta_schedule(schedule, n_timestep, linear_start=1e-4, linear_end=2e-2):
    if schedule == "linear":
        betas = np.linspace(linear_start, linear_end, n_timestep, dtype=np.float64)
    elif schedule == "quad":
        betas = np.linspace(linear_start ** 0.5, linear_end ** 0.5, n_timestep,
                            dtype=np.float64) ** 2
    else:
        raise NotImplementedError(schedule)
    return betas


# --------------------------------- Pallas kernel ---------------------------------------
def diffusion_loss_kernel(sca_ref,      # VMEM (TM, 1) f32  continuous_sqrt_alpha_cumprod per row
                          s1m_ref,      # VMEM (TM, 1) f32  sqrt(1 - sca^2) per row (precomputed)
                          x_ref,        # VMEM (TM, L) f32  x_start rows for this tile
                          n_ref,        # VMEM (TM, L) f32  noise rows for this tile
                          w1_ref,       # VMEM (L, H)  bf16 (resident across tiles)
                          b1_ref,       # VMEM (1, H)  f32
                          e1_ref,       # VMEM (1, H)  f32  noise-level embedding direction
                          w2_ref,       # VMEM (H, L)  bf16 (resident across tiles)
                          b2_ref,       # VMEM (1, L)  f32
                          part_ref):    # VMEM (1, 8, L) f32 per-tile partial L1 sums
    sca = sca_ref[...]                                    # (TM, 1)
    s1m = s1m_ref[...]                                    # (TM, 1)
    x = x_ref[...]                                        # (TM, L)
    noise = n_ref[...]                                    # (TM, L)

    # ---- q_sample: x_noisy = sca * x_start + sqrt(1 - sca^2) * noise (f32 VPU) ----
    x_noisy = sca * x + s1m * noise                       # (TM, L)

    # ---- synthetic denoise_fn: 2-layer MLP over the sequence axis (bf16 MXU, f32 acc) ----
    h = jnp.dot(x_noisy.astype(jnp.bfloat16), w1_ref[...],
                preferred_element_type=jnp.float32)       # (TM, H) f32
    h = jnp.tanh(h + b1_ref[...] + sca * e1_ref[...])     # (TM, H) f32
    x_recon = jnp.dot(h.astype(jnp.bfloat16), w2_ref[...],
                      preferred_element_type=jnp.float32) # (TM, L) f32
    x_recon = x_recon + b2_ref[...]

    # ---- L1 loss (reduction='sum'): emit lane-dense per-tile partials ----
    absdiff = jnp.abs(noise - x_recon)                    # (TM, L)
    TM, L = absdiff.shape
    # Fold rows in groups of 8 sublanes with pure VPU adds; cross-lane reduce is deferred
    # to a single jnp.sum in the wrapper.
    part_ref[0] = jnp.sum(absdiff.reshape(TM // 8, 8, L), axis=0)   # (8, L)


def gaussian_diffusion_loss(x_start, noise, sca, w1, b1, e1, w2, b2, *, tm=128):
    """x_start, noise: (B, C, L) f32; sca: (B,) f32; w1/w2 bf16. Returns scalar L1-sum loss."""
    B, C, L = x_start.shape
    H = w1.shape[1]
    M = B * C
    tm = min(tm, M)
    assert M % tm == 0 and tm % 8 == 0, (M, tm)
    num_tiles = M // tm

    # Flatten (B, C) -> M rows; per-row q_sample coefficients precomputed here.
    x2 = x_start.reshape(M, L)
    n2 = noise.reshape(M, L)
    sca_col = jnp.broadcast_to(sca.reshape(B, 1, 1).astype(jnp.float32),
                               (B, C, 1)).reshape(M, 1)
    s1m_col = jnp.sqrt(1.0 - sca_col * sca_col)

    partials = pl.pallas_call(
        diffusion_loss_kernel,
        out_shape=jax.ShapeDtypeStruct((num_tiles, 8, L), jnp.float32),
        grid_spec=pltpu.PrefetchScalarGridSpec(
            num_scalar_prefetch=0,
            grid=(num_tiles,),
            in_specs=[
                pl.BlockSpec((tm, 1), lambda i: (i, 0)),      # sca per row
                pl.BlockSpec((tm, 1), lambda i: (i, 0)),      # sqrt(1 - sca^2) per row
                pl.BlockSpec((tm, L), lambda i: (i, 0)),      # x_start rows
                pl.BlockSpec((tm, L), lambda i: (i, 0)),      # noise rows
                pl.BlockSpec((L, H), lambda i: (0, 0)),       # w1 (resident)
                pl.BlockSpec((1, H), lambda i: (0, 0)),       # b1
                pl.BlockSpec((1, H), lambda i: (0, 0)),       # e1
                pl.BlockSpec((H, L), lambda i: (0, 0)),       # w2 (resident)
                pl.BlockSpec((1, L), lambda i: (0, 0)),       # b2
            ],
            out_specs=pl.BlockSpec((1, 8, L), lambda i: (i, 0, 0)),   # independent partials
        ),
        compiler_params=pltpu.CompilerParams(
            # Per-tile partial outputs are independent -> safe to parallelize (2 TCs on v7x).
            dimension_semantics=("parallel",),
        ),
    )(sca_col, s1m_col, x2, n2, w1, b1, e1, w2, b2)

    return jnp.sum(partials)


# ------------------------------- pure-JAX reference ------------------------------------
def reference_loss(x_start, noise, sca, w1, b1, e1, w2, b2):
    B, C, L = x_start.shape
    sca3 = sca.reshape(B, 1, 1).astype(jnp.float32)
    x_noisy = sca3 * x_start + jnp.sqrt(1.0 - sca3 * sca3) * noise
    h = jnp.einsum("bcl,lh->bch", x_noisy.astype(jnp.bfloat16), w1,
                   preferred_element_type=jnp.float32)
    h = jnp.tanh(h + b1[None] + sca3 * e1[None])
    x_recon = jnp.einsum("bch,hl->bcl", h.astype(jnp.bfloat16), w2,
                         preferred_element_type=jnp.float32) + b2[None]
    return jnp.sum(jnp.abs(noise - x_recon))


# --------------------------------------- main ------------------------------------------
if __name__ == "__main__":
    # M = B*C = 128 rows -> full-height MXU tiles; L = H = 128.
    B, C, L, H = 8, 16, 128, 128
    n_timestep = 32

    # Noise schedule (matches set_new_noise_schedule with 'linear' schedule)
    betas = make_beta_schedule("linear", n_timestep)
    alphas = 1.0 - betas
    alphas_cumprod = np.cumprod(alphas, axis=0)
    sqrt_alphas_cumprod_prev = np.sqrt(np.append(1.0, alphas_cumprod))   # len n_timestep+1

    key = jax.random.PRNGKey(0)
    kx, kn, kt, ku, kw1, kw2, kb1, ke1, kb2 = jax.random.split(key, 9)

    # Inputs (deterministic)
    x_start = jax.random.normal(kx, (B, C, L), dtype=jnp.float32)
    noise = jax.random.normal(kn, (B, C, L), dtype=jnp.float32)

    # t ~ randint(1, num_timesteps+1); sca ~ U(sqrt_acp_prev[t-1], sqrt_acp_prev[t]) per batch
    t = int(jax.random.randint(kt, (), 1, n_timestep + 1))
    lo = float(sqrt_alphas_cumprod_prev[t - 1])
    hi = float(sqrt_alphas_cumprod_prev[t])
    u = jax.random.uniform(ku, (B,), dtype=jnp.float32)
    sca = (lo + (hi - lo) * u).astype(jnp.float32)                       # (B,)

    # Deterministic synthetic denoise_fn parameters; weights stored bf16 at rest.
    w1 = (jax.random.normal(kw1, (L, H), dtype=jnp.float32) / math.sqrt(L)).astype(jnp.bfloat16)
    w2 = (jax.random.normal(kw2, (H, L), dtype=jnp.float32) / math.sqrt(H)).astype(jnp.bfloat16)
    b1 = 0.01 * jax.random.normal(kb1, (1, H), dtype=jnp.float32)
    e1 = 0.01 * jax.random.normal(ke1, (1, H), dtype=jnp.float32)
    b2 = 0.01 * jax.random.normal(kb2, (1, L), dtype=jnp.float32)

    loss = gaussian_diffusion_loss(x_start, noise, sca, w1, b1, e1, w2, b2)
    loss = jax.block_until_ready(loss)

    ref = reference_loss(x_start, noise, sca, w1, b1, e1, w2, b2)
    ref = jax.block_until_ready(ref)

    loss_np = np.asarray(loss)
    ref_np = np.asarray(ref)
    assert np.abs(loss_np - ref_np) <= 2e-3 * np.abs(ref_np) + 1e-2, (loss_np, ref_np)
    print("KERNEL_OK")
</pallas_src>

<mosaic_0001>
module attributes {stable_mosaic.version = 11 : i64} {
  func.func @diffusion_loss_kernel(%arg0: i32, %arg1: memref<128x1xf32, #tpu.memory_space<vmem>>, %arg2: memref<128x1xf32, #tpu.memory_space<vmem>>, %arg3: memref<128x128xf32, #tpu.memory_space<vmem>>, %arg4: memref<128x128xf32, #tpu.memory_space<vmem>>, %arg5: memref<128x128xbf16, #tpu.memory_space<vmem>>, %arg6: memref<1x128xf32, #tpu.memory_space<vmem>>, %arg7: memref<1x128xf32, #tpu.memory_space<vmem>>, %arg8: memref<128x128xbf16, #tpu.memory_space<vmem>>, %arg9: memref<1x128xf32, #tpu.memory_space<vmem>>, %arg10: memref<1x8x128xf32, #tpu.memory_space<vmem>>) attributes {dimension_semantics = [#tpu.dimension_semantics<parallel>], iteration_bounds = array<i64: 1>, scalar_prefetch = 0 : i64, scratch_operands = 0 : i64, tpu.core_type = #tpu.core_type<tc>, window_params = [{transform_indices = @transform_0, window_bounds = array<i64: 128, 1>}, {transform_indices = @transform_1, window_bounds = array<i64: 128, 1>}, {transform_indices = @transform_2, window_bounds = array<i64: 128, 128>}, {transform_indices = @transform_3, window_bounds = array<i64: 128, 128>}, {pipeline_mode = #tpu.pipeline_mode<synchronous>, transform_indices = @transform_4, window_bounds = array<i64: 128, 128>}, {pipeline_mode = #tpu.pipeline_mode<synchronous>, transform_indices = @transform_5, window_bounds = array<i64: 1, 128>}, {pipeline_mode = #tpu.pipeline_mode<synchronous>, transform_indices = @transform_6, window_bounds = array<i64: 1, 128>}, {pipeline_mode = #tpu.pipeline_mode<synchronous>, transform_indices = @transform_7, window_bounds = array<i64: 128, 128>}, {pipeline_mode = #tpu.pipeline_mode<synchronous>, transform_indices = @transform_8, window_bounds = array<i64: 1, 128>}, {transform_indices = @transform_9, window_bounds = array<i64: 1, 8, 128>}]} {
    %c0 = arith.constant 0 : index
    %c0_0 = arith.constant 0 : index
    %0 = vector.load %arg1[%c0, %c0_0] : memref<128x1xf32, #tpu.memory_space<vmem>>, vector<128x1xf32>
    %c0_1 = arith.constant 0 : index
    %c0_2 = arith.constant 0 : index
    %1 = vector.load %arg2[%c0_1, %c0_2] : memref<128x1xf32, #tpu.memory_space<vmem>>, vector<128x1xf32>
    %c0_3 = arith.constant 0 : index
    %c0_4 = arith.constant 0 : index
    %2 = vector.load %arg3[%c0_3, %c0_4] : memref<128x128xf32, #tpu.memory_space<vmem>>, vector<128x128xf32>
    %c0_5 = arith.constant 0 : index
    %c0_6 = arith.constant 0 : index
    %3 = vector.load %arg4[%c0_5, %c0_6] : memref<128x128xf32, #tpu.memory_space<vmem>>, vector<128x128xf32>
    %4 = vector.broadcast %0 : vector<128x1xf32> to vector<128x128xf32>
    %5 = arith.mulf %4, %2 : vector<128x128xf32>
    %6 = vector.broadcast %1 : vector<128x1xf32> to vector<128x128xf32>
    %7 = arith.mulf %6, %3 : vector<128x128xf32>
    %8 = arith.addf %5, %7 : vector<128x128xf32>
    %9 = arith.truncf %8 : vector<128x128xf32> to vector<128x128xbf16>
    %c0_7 = arith.constant 0 : index
    %c0_8 = arith.constant 0 : index
    %10 = vector.load %arg5[%c0_7, %c0_8] : memref<128x128xbf16, #tpu.memory_space<vmem>>, vector<128x128xbf16>
    %cst = arith.constant dense<0.000000e+00> : vector<128x128xf32>
    %11 = tpu.matmul %9, %10, %cst {dimension_numbers = #tpu.dot_dimension_numbers<[1], [0], [0], [1], [0, 0, 1, 1], [], []>} : vector<128x128xbf16>, vector<128x128xbf16>, vector<128x128xf32> -> vector<128x128xf32>
    %c0_9 = arith.constant 0 : index
    %c0_10 = arith.constant 0 : index
    %12 = vector.load %arg6[%c0_9, %c0_10] : memref<1x128xf32, #tpu.memory_space<vmem>>, vector<1x128xf32>
    %13 = vector.broadcast %12 : vector<1x128xf32> to vector<128x128xf32>
    %14 = arith.addf %11, %13 : vector<128x128xf32>
    %c0_11 = arith.constant 0 : index
    %c0_12 = arith.constant 0 : index
    %15 = vector.load %arg7[%c0_11, %c0_12] : memref<1x128xf32, #tpu.memory_space<vmem>>, vector<1x128xf32>
    %16 = vector.broadcast %0 : vector<128x1xf32> to vector<128x128xf32>
    %17 = vector.broadcast %15 : vector<1x128xf32> to vector<128x128xf32>
    %18 = arith.mulf %16, %17 : vector<128x128xf32>
    %19 = arith.addf %14, %18 : vector<128x128xf32>
    %20 = math.tanh %19 : vector<128x128xf32>
    %21 = arith.truncf %20 : vector<128x128xf32> to vector<128x128xbf16>
    %c0_13 = arith.constant 0 : index
    %c0_14 = arith.constant 0 : index
    %22 = vector.load %arg8[%c0_13, %c0_14] : memref<128x128xbf16, #tpu.memory_space<vmem>>, vector<128x128xbf16>
    %cst_15 = arith.constant dense<0.000000e+00> : vector<128x128xf32>
    %23 = tpu.matmul %21, %22, %cst_15 {dimension_numbers = #tpu.dot_dimension_numbers<[1], [0], [0], [1], [0, 0, 1, 1], [], []>} : vector<128x128xbf16>, vector<128x128xbf16>, vector<128x128xf32> -> vector<128x128xf32>
    %c0_16 = arith.constant 0 : index
    %c0_17 = arith.constant 0 : index
    %24 = vector.load %arg9[%c0_16, %c0_17] : memref<1x128xf32, #tpu.memory_space<vmem>>, vector<1x128xf32>
    %25 = vector.broadcast %24 : vector<1x128xf32> to vector<128x128xf32>
    %26 = arith.addf %23, %25 : vector<128x128xf32>
    %27 = arith.subf %3, %26 : vector<128x128xf32>
    %28 = math.absf %27 : vector<128x128xf32>
    %29 = vector.shape_cast %28 : vector<128x128xf32> to vector<16x8x128xf32>
    %cst_18 = arith.constant dense<0.000000e+00> : vector<8x128xf32>
    %30 = vector.multi_reduction <add>, %29, %cst_18 [0] : vector<16x8x128xf32> to vector<8x128xf32>
    %c0_19 = arith.constant 0 : index
    %c0_20 = arith.constant 0 : index
    %c0_21 = arith.constant 0 : index
    %31 = vector.load %arg10[%c0_19, %c0_20, %c0_21] : memref<1x8x128xf32, #tpu.memory_space<vmem>>, vector<1x8x128xf32>
    %32 = vector.shape_cast %31 : vector<1x8x128xf32> to vector<8x128xf32>
    %33 = vector.shape_cast %30 : vector<8x128xf32> to vector<1x8x128xf32>
    tpu.vector_store %arg10[%c0_19, %c0_20, %c0_21], %33 {strides = array<i32>} : memref<1x8x128xf32, #tpu.memory_space<vmem>>, vector<1x8x128xf32>,
    return
  }
  func.func @transform_0(%arg0: i32) -> (i32, i32) {
    %c0_i32 = arith.constant 0 : i32
    %c0_i32_0 = arith.constant 0 : i32
    return %arg0, %c0_i32 : i32, i32
  }
  func.func @transform_1(%arg0: i32) -> (i32, i32) {
    %c0_i32 = arith.constant 0 : i32
    %c0_i32_0 = arith.constant 0 : i32
    return %arg0, %c0_i32 : i32, i32
  }
  func.func @transform_2(%arg0: i32) -> (i32, i32) {
    %c0_i32 = arith.constant 0 : i32
    %c0_i32_0 = arith.constant 0 : i32
    return %arg0, %c0_i32 : i32, i32
  }
  func.func @transform_3(%arg0: i32) -> (i32, i32) {
    %c0_i32 = arith.constant 0 : i32
    %c0_i32_0 = arith.constant 0 : i32
    return %arg0, %c0_i32 : i32, i32
  }
  func.func @transform_4(%arg0: i32) -> (i32, i32) {
    %c0_i32 = arith.constant 0 : i32
    %c0_i32_0 = arith.constant 0 : i32
    %c0_i32_1 = arith.constant 0 : i32
    return %c0_i32, %c0_i32_0 : i32, i32
  }
  func.func @transform_5(%arg0: i32) -> (i32, i32) {
    %c0_i32 = arith.constant 0 : i32
    %c0_i32_0 = arith.constant 0 : i32
    %c0_i32_1 = arith.constant 0 : i32
    return %c0_i32, %c0_i32_0 : i32, i32
  }
  func.func @transform_6(%arg0: i32) -> (i32, i32) {
    %c0_i32 = arith.constant 0 : i32
    %c0_i32_0 = arith.constant 0 : i32
    %c0_i32_1 = arith.constant 0 : i32
    return %c0_i32, %c0_i32_0 : i32, i32
  }
  func.func @transform_7(%arg0: i32) -> (i32, i32) {
    %c0_i32 = arith.constant 0 : i32
    %c0_i32_0 = arith.constant 0 : i32
    %c0_i32_1 = arith.constant 0 : i32
    return %c0_i32, %c0_i32_0 : i32, i32
  }
  func.func @transform_8(%arg0: i32) -> (i32, i32) {
    %c0_i32 = arith.constant 0 : i32
    %c0_i32_0 = arith.constant 0 : i32
    %c0_i32_1 = arith.constant 0 : i32
    return %c0_i32, %c0_i32_0 : i32, i32
  }
  func.func @transform_9(%arg0: i32) -> (i32, i32, i32) {
    %c0_i32 = arith.constant 0 : i32
    %c0_i32_0 = arith.constant 0 : i32
    %c0_i32_1 = arith.constant 0 : i32
    return %arg0, %c0_i32, %c0_i32_0 : i32, i32, i32
  }
}

</mosaic_0001>

<llo_original>
// kernel: tpu_custom_call.1
$region0: #{tpu_custom_call.1}
  #allocation0 [shape = 'u32[]', space=smem, size = 0x4, offset = 0x4, fixed_abs, tag = 'smem constant byte address 0x4 - core index']
  #allocation1 [shape = 'u32[144,128]{1,0:T(1,128)}', space=vmem, size = 0x12000, scoped, tag = 'internal scratch']
  %s0 = inlined_call_operand.vmem [shape: f32[128,1], index: 0, kind: input, shape index: {}]
  %s1 = inlined_call_operand.vmem [shape: f32[128,1], index: 1, kind: input, shape index: {}]
  %s2 = inlined_call_operand.vmem [shape: f32[128,128], index: 2, kind: input, shape index: {}]
  %s3 = inlined_call_operand.vmem [shape: f32[128,128], index: 3, kind: input, shape index: {}]
  %s4 = inlined_call_operand.hbm [shape: bf16[128,128], index: 4, kind: input, shape index: {}]
  %s5 = inlined_call_operand.vmem [shape: f32[1,128], index: 5, kind: input, shape index: {}]
  %s6 = inlined_call_operand.vmem [shape: f32[1,128], index: 6, kind: input, shape index: {}]
  %s7 = inlined_call_operand.hbm [shape: bf16[128,128], index: 7, kind: input, shape index: {}]
  %s8 = inlined_call_operand.vmem [shape: f32[1,128], index: 8, kind: input, shape index: {}]
  %s9 = inlined_call_operand.hbm [shape: f32[1,8,128], index: 9, kind: output, shape index: {}]
  %s10 = sld [smem:[#allocation0]]
  $region54: #{tpu_custom_call.1} parent=0
    _
  %s12 = ssub.s32 1, %s10
  %s13 = scalar_select 0, %s12, %s10
  $region1: #{tpu_custom_call.1} parent=0
    #allocation2 [shape = 'u8[32768]{0}', space=vmem, size = 0x8000, scoped, tag = 'input window, operand 4, single buffered']
    #allocation3 [shape = 's32[1]{0}', space=sflag, size = 0x4, scoped, tag = 'scoped memory for tpu_custom_call.1']
    #allocation4 [shape = 's32[1]{0}', space=sflag, size = 0x4, scoped, tag = 'scoped memory for tpu_custom_call.1']
    #allocation5 [shape = 'u8[32768]{0}', space=vmem, size = 0x8000, scoped, tag = 'input window, operand 7, single buffered']
    #allocation6 [shape = 's32[1]{0}', space=sflag, size = 0x4, scoped, tag = 'scoped memory for tpu_custom_call.1']
    #allocation7 [shape = 'u8[4096]{0}', space=vmem, size = 0x1000, scoped, tag = 'output window, operand 0, single buffered']
    %14 = vsyncpa [#allocation3], 0
    %15 = vsyncpa [#allocation6], 0
    %16 = vsyncpa [#allocation4], 0
    // Predicated region
    $region2: #{tpu_custom_call.1} parent=1 // pred_check
      _
    $region3: #{tpu_custom_call.1} parent=1 // pred_check_branch
      %18 = sbr.rel (0) target = $region5
    $region4: #{tpu_custom_call.1} parent=1 // pred_region
      _
    $region5: #{tpu_custom_call.1} parent=1 // pred_fallthru
      _
    // Predicated region
    $region6: #{tpu_custom_call.1} parent=1 // pred_check
      _
    $region7: #{tpu_custom_call.1} parent=1 // pred_check_branch
      %20 = sbr.rel (0) target = $region9
    $region8: #{tpu_custom_call.1} parent=1 // pred_region
      _
    $region9: #{tpu_custom_call.1} parent=1 // pred_fallthru
      _
    // Predicated region
    $region10: #{tpu_custom_call.1} parent=1 // pred_check
      _
    $region11: #{tpu_custom_call.1} parent=1 // pred_check_branch
      %22 = sbr.rel (0) target = $region13
    $region12: #{tpu_custom_call.1} parent=1 // pred_region
      _
    $region13: #{tpu_custom_call.1} parent=1 // pred_fallthru
      _
    // Predicated region
    $region14: #{tpu_custom_call.1} parent=1 // pred_check
      _
    $region15: #{tpu_custom_call.1} parent=1 // pred_check_branch
      %24 = sbr.rel (0) target = $region17
    $region16: #{tpu_custom_call.1} parent=1 // pred_region
      _
    $region17: #{tpu_custom_call.1} parent=1 // pred_fallthru
      _
    // Predicated region
    $region18: #{tpu_custom_call.1} parent=1 // pred_check
      _
    $region19: #{tpu_custom_call.1} parent=1 // pred_check_branch
      %26 = sbr.rel (0) target = $region21
    $region20: #{tpu_custom_call.1} parent=1 // pred_region
      %s28 = ssub.s32 1024, 1024
      %29 = vsyncadd [#allocation3], %s28
      %s30 = sshll.u32 [#allocation2], 4
      %s31 = int_to_ptr.vmem [resolvable:$true] %s30
      %36 = dma.hbm_to_vmem [thread:$0]  %s4, 1024, %s31, [#allocation3], 64, 64, 4
    $region21: #{tpu_custom_call.1} parent=1 // pred_fallthru
      _
    // Predicated region
    $region22: #{tpu_custom_call.1} parent=1 // pred_check
      _
    $region23: #{tpu_custom_call.1} parent=1 // pred_check_branch
      %38 = sbr.rel (0) target = $region25
    $region24: #{tpu_custom_call.1} parent=1 // pred_region
      _
    $region25: #{tpu_custom_call.1} parent=1 // pred_fallthru
      _
    // Predicated region
    $region26: #{tpu_custom_call.1} parent=1 // pred_check
      _
    $region27: #{tpu_custom_call.1} parent=1 // pred_check_branch
      %40 = sbr.rel (0) target = $region29
    $region28: #{tpu_custom_call.1} parent=1 // pred_region
      _
    $region29: #{tpu_custom_call.1} parent=1 // pred_fallthru
      _
    // Predicated region
    $region30: #{tpu_custom_call.1} parent=1 // pred_check
      _
    $region31: #{tpu_custom_call.1} parent=1 // pred_check_branch
      %42 = sbr.rel (0) target = $region33
    $region32: #{tpu_custom_call.1} parent=1 // pred_region
      %s44 = ssub.s32 1024, 1024
      %45 = vsyncadd [#allocation6], %s44
      %s46 = sshll.u32 [#allocation5], 4
      %s47 = int_to_ptr.vmem [resolvable:$true] %s46
      %52 = dma.hbm_to_vmem [thread:$0]  %s7, 1024, %s47, [#allocation6], 64, 64, 4
    $region33: #{tpu_custom_call.1} parent=1 // pred_fallthru
      _
    // Predicated region
    $region34: #{tpu_custom_call.1} parent=1 // pred_check
      _
    $region35: #{tpu_custom_call.1} parent=1 // pred_check_branch
      %54 = sbr.rel (0) target = $region37
    $region36: #{tpu_custom_call.1} parent=1 // pred_region
      _
    $region37: #{tpu_custom_call.1} parent=1 // pred_fallthru
      _
    // Predicated region
    $region38: #{tpu_custom_call.1} parent=1 // pred_check
      _
    $region39: #{tpu_custom_call.1} parent=1 // pred_check_branch
      %56 = sbr.rel (0) target = $region41
    $region40: #{tpu_custom_call.1} parent=1 // pred_region
      %57 = dma.done [#allocation3], 1024
    $region41: #{tpu_custom_call.1} parent=1 // pred_fallthru
      _
    // Predicated region
    $region42: #{tpu_custom_call.1} parent=1 // pred_check
      _
    $region43: #{tpu_custom_call.1} parent=1 // pred_check_branch
      %59 = sbr.rel (0) target = $region45
    $region44: #{tpu_custom_call.1} parent=1 // pred_region
      %60 = dma.done [#allocation6], 1024
    $region45: #{tpu_custom_call.1} parent=1 // pred_fallthru
      _
    %v62 = vld [vmem:[%s0] sm:$0xff]
    %v63 = vld [vmem:[%s0 + $0x8] sm:$0xff]
    %v64 = vld [vmem:[%s0 + $0x10] sm:$0xff]
    %v65 = vld [vmem:[%s0 + $0x18] sm:$0xff]
    %v66 = vld [vmem:[%s0 + $0x20] sm:$0xff]
    %v67 = vld [vmem:[%s0 + $0x28] sm:$0xff]
    %v68 = vld [vmem:[%s0 + $0x30] sm:$0xff]
    %v69 = vld [vmem:[%s0 + $0x38] sm:$0xff]
    %v70 = vld [vmem:[%s0 + $0x40] sm:$0xff]
    %v71 = vld [vmem:[%s0 + $0x48] sm:$0xff]
    %v72 = vld [vmem:[%s0 + $0x50] sm:$0xff]
    %v73 = vld [vmem:[%s0 + $0x58] sm:$0xff]
    %v74 = vld [vmem:[%s0 + $0x60] sm:$0xff]
    %v75 = vld [vmem:[%s0 + $0x68] sm:$0xff]
    %v76 = vld [vmem:[%s0 + $0x70] sm:$0xff]
    %v77 = vld [vmem:[%s0 + $0x78] sm:$0xff]
    %v78 = vld [vmem:[%s1] sm:$0xff]
    %v79 = vld [vmem:[%s1 + $0x8] sm:$0xff]
    %v80 = vld [vmem:[%s1 + $0x10] sm:$0xff]
    %v81 = vld [vmem:[%s1 + $0x18] sm:$0xff]
    %v82 = vld [vmem:[%s1 + $0x20] sm:$0xff]
    %v83 = vld [vmem:[%s1 + $0x28] sm:$0xff]
    %v84 = vld [vmem:[%s1 + $0x30] sm:$0xff]
    %v85 = vld [vmem:[%s1 + $0x38] sm:$0xff]
    %v86 = vld [vmem:[%s1 + $0x40] sm:$0xff]
    %v87 = vld [vmem:[%s1 + $0x48] sm:$0xff]
    %v88 = vld [vmem:[%s1 + $0x50] sm:$0xff]
    %v89 = vld [vmem:[%s1 + $0x58] sm:$0xff]
    %v90 = vld [vmem:[%s1 + $0x60] sm:$0xff]
    %v91 = vld [vmem:[%s1 + $0x68] sm:$0xff]
    %v92 = vld [vmem:[%s1 + $0x70] sm:$0xff]
    %v93 = vld [vmem:[%s1 + $0x78] sm:$0xff]
    %v94 = vld [vmem:[%s2] sm:$0xff]
    %v95 = vld [vmem:[%s2 + $0x8] sm:$0xff]
    %v96 = vld [vmem:[%s2 + $0x10] sm:$0xff]
    %v97 = vld [vmem:[%s2 + $0x18] sm:$0xff]
    %v98 = vld [vmem:[%s2 + $0x20] sm:$0xff]
    %v99 = vld [vmem:[%s2 + $0x28] sm:$0xff]
    %v100 = vld [vmem:[%s2 + $0x30] sm:$0xff]
    %v101 = vld [vmem:[%s2 + $0x38] sm:$0xff]
    %v102 = vld [vmem:[%s2 + $0x40] sm:$0xff]
    %v103 = vld [vmem:[%s2 + $0x48] sm:$0xff]
    %v104 = vld [vmem:[%s2 + $0x50] sm:$0xff]
    %v105 = vld [vmem:[%s2 + $0x58] sm:$0xff]
    %v106 = vld [vmem:[%s2 + $0x60] sm:$0xff]
    %v107 = vld [vmem:[%s2 + $0x68] sm:$0xff]
    %v108 = vld [vmem:[%s2 + $0x70] sm:$0xff]
    %v109 = vld [vmem:[%s2 + $0x78] sm:$0xff]
    %v110 = vld [vmem:[%s3] sm:$0xff]
    %v111 = vld [vmem:[%s3 + $0x8] sm:$0xff]
    %v112 = vld [vmem:[%s3 + $0x10] sm:$0xff]
    %v113 = vld [vmem:[%s3 + $0x18] sm:$0xff]
    %v114 = vld [vmem:[%s3 + $0x20] sm:$0xff]
    %v115 = vld [vmem:[%s3 + $0x28] sm:$0xff]
    %v116 = vld [vmem:[%s3 + $0x30] sm:$0xff]
    %v117 = vld [vmem:[%s3 + $0x38] sm:$0xff]
    %v118 = vld [vmem:[%s3 + $0x40] sm:$0xff]
    %v119 = vld [vmem:[%s3 + $0x48] sm:$0xff]
    %v120 = vld [vmem:[%s3 + $0x50] sm:$0xff]
    %v121 = vld [vmem:[%s3 + $0x58] sm:$0xff]
    %v122 = vld [vmem:[%s3 + $0x60] sm:$0xff]
    %v123 = vld [vmem:[%s3 + $0x68] sm:$0xff]
    %v124 = vld [vmem:[%s3 + $0x70] sm:$0xff]
    %v125 = vld [vmem:[%s3 + $0x78] sm:$0xff]
    %127 = vset.pattern.permute.xlu0 0
    %128 = vperm.xlu0 %127, %v62
    %v129 = vpop.permute.xlu0 %128
    %132 = vset.pattern.permute.xlu0 0
    %133 = vperm.xlu0 %132, %v63
    %v134 = vpop.permute.xlu0 %133
    %137 = vset.pattern.permute.xlu0 0
    %138 = vperm.xlu0 %137, %v64
    %v139 = vpop.permute.xlu0 %138
    %142 = vset.pattern.permute.xlu0 0
    %143 = vperm.xlu0 %142, %v65
    %v144 = vpop.permute.xlu0 %143
    %147 = vset.pattern.permute.xlu0 0
    %148 = vperm.xlu0 %147, %v66
    %v149 = vpop.permute.xlu0 %148
    %152 = vset.pattern.permute.xlu0 0
    %153 = vperm.xlu0 %152, %v67
    %v154 = vpop.permute.xlu0 %153
    %157 = vset.pattern.permute.xlu0 0
    %158 = vperm.xlu0 %157, %v68
    %v159 = vpop.permute.xlu0 %158
    %162 = vset.pattern.permute.xlu0 0
    %163 = vperm.xlu0 %162, %v69
    %v164 = vpop.permute.xlu0 %163
    %167 = vset.pattern.permute.xlu0 0
    %168 = vperm.xlu0 %167, %v70
    %v169 = vpop.permute.xlu0 %168
    %172 = vset.pattern.permute.xlu0 0
    %173 = vperm.xlu0 %172, %v71
    %v174 = vpop.permute.xlu0 %173
    %177 = vset.pattern.permute.xlu0 0
    %178 = vperm.xlu0 %177, %v72
    %v179 = vpop.permute.xlu0 %178
    %182 = vset.pattern.permute.xlu0 0
    %183 = vperm.xlu0 %182, %v73
    %v184 = vpop.permute.xlu0 %183
    %187 = vset.pattern.permute.xlu0 0
    %188 = vperm.xlu0 %187, %v74
    %v189 = vpop.permute.xlu0 %188
    %192 = vset.pattern.permute.xlu0 0
    %193 = vperm.xlu0 %192, %v75
    %v194 = vpop.permute.xlu0 %193
    %197 = vset.pattern.permute.xlu0 0
    %198 = vperm.xlu0 %197, %v76
    %v199 = vpop.permute.xlu0 %198
    %202 = vset.pattern.permute.xlu0 0
    %203 = vperm.xlu0 %202, %v77
    %v204 = vpop.permute.xlu0 %203
    %v206 = vmul.f32 %v129, %v94
    %v207 = vmul.f32 %v134, %v95
    %v208 = vmul.f32 %v139, %v96
    %v209 = vmul.f32 %v144, %v97
    %v210 = vmul.f32 %v149, %v98
    %v211 = vmul.f32 %v154, %v99
    %v212 = vmul.f32 %v159, %v100
    %v213 = vmul.f32 %v164, %v101
    %v214 = vmul.f32 %v169, %v102
    %v215 = vmul.f32 %v174, %v103
    %v216 = vmul.f32 %v179, %v104
    %v217 = vmul.f32 %v184, %v105
    %v218 = vmul.f32 %v189, %v106
    %v219 = vmul.f32 %v194, %v107
    %v220 = vmul.f32 %v199, %v108
    %v221 = vmul.f32 %v204, %v109
    %223 = vset.pattern.permute.xlu0 0
    %224 = vperm.xlu0 %223, %v78
    %v225 = vpop.permute.xlu0 %224
    %228 = vset.pattern.permute.xlu0 0
    %229 = vperm.xlu0 %228, %v79
    %v230 = vpop.permute.xlu0 %229
    %233 = vset.pattern.permute.xlu0 0
    %234 = vperm.xlu0 %233, %v80
    %v235 = vpop.permute.xlu0 %234
    %238 = vset.pattern.permute.xlu0 0
    %239 = vperm.xlu0 %238, %v81
    %v240 = vpop.permute.xlu0 %239
    %243 = vset.pattern.permute.xlu0 0
    %244 = vperm.xlu0 %243, %v82
    %v245 = vpop.permute.xlu0 %244
    %248 = vset.pattern.permute.xlu0 0
    %249 = vperm.xlu0 %248, %v83
    %v250 = vpop.permute.xlu0 %249
    %253 = vset.pattern.permute.xlu0 0
    %254 = vperm.xlu0 %253, %v84
    %v255 = vpop.permute.xlu0 %254
    %258 = vset.pattern.permute.xlu0 0
    %259 = vperm.xlu0 %258, %v85
    %v260 = vpop.permute.xlu0 %259
    %263 = vset.pattern.permute.xlu0 0
    %264 = vperm.xlu0 %263, %v86
    %v265 = vpop.permute.xlu0 %264
    %268 = vset.pattern.permute.xlu0 0
    %269 = vperm.xlu0 %268, %v87
    %v270 = vpop.permute.xlu0 %269
    %273 = vset.pattern.permute.xlu0 0
    %274 = vperm.xlu0 %273, %v88
    %v275 = vpop.permute.xlu0 %274
    %278 = vset.pattern.permute.xlu0 0
    %279 = vperm.xlu0 %278, %v89
    %v280 = vpop.permute.xlu0 %279
    %283 = vset.pattern.permute.xlu0 0
    %284 = vperm.xlu0 %283, %v90
    %v285 = vpop.permute.xlu0 %284
    %288 = vset.pattern.permute.xlu0 0
    %289 = vperm.xlu0 %288, %v91
    %v290 = vpop.permute.xlu0 %289
    %293 = vset.pattern.permute.xlu0 0
    %294 = vperm.xlu0 %293, %v92
    %v295 = vpop.permute.xlu0 %294
    %298 = vset.pattern.permute.xlu0 0
    %299 = vperm.xlu0 %298, %v93
    %v300 = vpop.permute.xlu0 %299
    %v302 = vmul.f32 %v225, %v110
    %v303 = vmul.f32 %v230, %v111
    %v304 = vmul.f32 %v235, %v112
    %v305 = vmul.f32 %v240, %v113
    %v306 = vmul.f32 %v245, %v114
    %v307 = vmul.f32 %v250, %v115
    %v308 = vmul.f32 %v255, %v116
    %v309 = vmul.f32 %v260, %v117
    %v310 = vmul.f32 %v265, %v118
    %v311 = vmul.f32 %v270, %v119
    %v312 = vmul.f32 %v275, %v120
    %v313 = vmul.f32 %v280, %v121
    %v314 = vmul.f32 %v285, %v122
    %v315 = vmul.f32 %v290, %v123
    %v316 = vmul.f32 %v295, %v124
    %v317 = vmul.f32 %v300, %v125
    %v318 = vadd.f32 %v206, %v302
    %v319 = vadd.f32 %v207, %v303
    %v320 = vadd.f32 %v208, %v304
    %v321 = vadd.f32 %v209, %v305
    %v322 = vadd.f32 %v210, %v306
    %v323 = vadd.f32 %v211, %v307
    %v324 = vadd.f32 %v212, %v308
    %v325 = vadd.f32 %v213, %v309
    %v326 = vadd.f32 %v214, %v310
    %v327 = vadd.f32 %v215, %v311
    %v328 = vadd.f32 %v216, %v312
    %v329 = vadd.f32 %v217, %v313
    %v330 = vadd.f32 %v218, %v314
    %v331 = vadd.f32 %v219, %v315
    %v332 = vadd.f32 %v220, %v316
    %v333 = vadd.f32 %v221, %v317
    %v334 = vpack.c.bf16 %v319, %v318
    %v335 = vpack.c.bf16 %v321, %v320
    %v336 = vpack.c.bf16 %v323, %v322
    %v337 = vpack.c.bf16 %v325, %v324
    %v338 = vpack.c.bf16 %v327, %v326
    %v339 = vpack.c.bf16 %v329, %v328
    %v340 = vpack.c.bf16 %v331, %v330
    %v341 = vpack.c.bf16 %v333, %v332
    %v342 = vld [vmem:[#allocation2] sm:$0xf]
    %v343 = vld [vmem:[#allocation2 + $0x4] sm:$0xf]
    %v344 = vld [vmem:[#allocation2 + $0x8] sm:$0xf]
    %v345 = vld [vmem:[#allocation2 + $0xc] sm:$0xf]
    %v346 = vld [vmem:[#allocation2 + $0x10] sm:$0xf]
    %v347 = vld [vmem:[#allocation2 + $0x14] sm:$0xf]
    %v348 = vld [vmem:[#allocation2 + $0x18] sm:$0xf]
    %v349 = vld [vmem:[#allocation2 + $0x1c] sm:$0xf]
    %v350 = vld [vmem:[#allocation2 + $0x20] sm:$0xf]
    %v351 = vld [vmem:[#allocation2 + $0x24] sm:$0xf]
    %v352 = vld [vmem:[#allocation2 + $0x28] sm:$0xf]
    %v353 = vld [vmem:[#allocation2 + $0x2c] sm:$0xf]
    %v354 = vld [vmem:[#allocation2 + $0x30] sm:$0xf]
    %v355 = vld [vmem:[#allocation2 + $0x34] sm:$0xf]
    %v356 = vld [vmem:[#allocation2 + $0x38] sm:$0xf]
    %v357 = vld [vmem:[#allocation2 + $0x3c] sm:$0xf]
    %v358 = vld [vmem:[%s5] sm:$0x1]
    %v360 = vlaneseq
    %v361 = vshrl.u32 %v360, 7
    %v362 = vsub.s32 0, %v361
    %v363 = vrot.slane %v358, %v362
    %v381 = vunpack.c.l.b16 %v342
    %v382 = vunpack.c.l.b16 %v343
    %v383 = vunpack.c.l.b16 %v344
    %v384 = vunpack.c.l.b16 %v345
    %v385 = vunpack.c.l.b16 %v346
    %v386 = vunpack.c.l.b16 %v347
    %v387 = vunpack.c.l.b16 %v348
    %v388 = vunpack.c.l.b16 %v349
    %v389 = vunpack.c.l.b16 %v350
    %v390 = vunpack.c.l.b16 %v351
    %v391 = vunpack.c.l.b16 %v352
    %v392 = vunpack.c.l.b16 %v353
    %v393 = vunpack.c.l.b16 %v354
    %v394 = vunpack.c.l.b16 %v355
    %v395 = vunpack.c.l.b16 %v356
    %v396 = vunpack.c.l.b16 %v357
    %v397 = vpack.c.b16 %v382, %v381
    %v398 = vpack.c.b16 %v384, %v383
    %v399 = vpack.c.b16 %v386, %v385
    %v400 = vpack.c.b16 %v388, %v387
    %v401 = vpack.c.b16 %v390, %v389
    %v402 = vpack.c.b16 %v392, %v391
    %v403 = vpack.c.b16 %v394, %v393
    %v404 = vpack.c.b16 %v396, %v395
    %413 = vmatprep.subr.bf16.mxu0 0
    %414 = vmatpush1.bf16.msra.mxu0 %v397
    %415 = vmatprep.subr.bf16.mxu0 0
    %416 = vmatpush1.bf16.msra.mxu0 %v398
    %417 = vmatprep.subr.bf16.mxu0 0
    %418 = vmatpush1.bf16.msra.mxu0 %v399
    %419 = vmatprep.subr.bf16.mxu0 0
    %420 = vmatpush1.bf16.msra.mxu0 %v400
    %421 = vmatprep.subr.bf16.mxu0 0
    %422 = vmatpush1.bf16.msra.mxu0 %v401
    %423 = vmatprep.subr.bf16.mxu0 0
    %424 = vmatpush1.bf16.msra.mxu0 %v402
    %425 = vmatprep.subr.bf16.mxu0 0
    %426 = vmatpush1.bf16.msra.mxu0 %v403
    %427 = vmatprep.subr.bf16.mxu0 0
    %428 = vmatpush1.bf16.msra.mxu0 %v404
    %429 = vmatprep.subr.bf16.mxu0 0
    %430 = vmatpush1.bf16.msra.mxu0 0
    %431 = vmatprep.subr.bf16.mxu0 0
    %432 = vmatpush1.bf16.msra.mxu0 0
    %433 = vmatprep.subr.bf16.mxu0 0
    %434 = vmatpush1.bf16.msra.mxu0 0
    %435 = vmatprep.subr.bf16.mxu0 0
    %436 = vmatpush1.bf16.msra.mxu0 0
    %437 = vmatprep.subr.bf16.mxu0 0
    %438 = vmatpush1.bf16.msra.mxu0 0
    %439 = vmatprep.subr.bf16.mxu0 0
    %440 = vmatpush1.bf16.msra.mxu0 0
    %441 = vmatprep.subr.bf16.mxu0 0
    %442 = vmatpush1.bf16.msra.mxu0 0
    %443 = vmatprep.subr.bf16.mxu0 0
    %444 = vmatpush1.bf16.msra.mxu0 0
    %445 = vmatprep.mubr.bf16.mxu0 0
    %446 = vmatmul.mubr.bf16.gmra.mrb[0].mxu0 %v334
    %v447 = vpop.f32.mrb[0].mxu0
    %v448 = vadd.f32 %v363, %v447
    %v449 = vpop.f32.mrb[0].mxu0
    %v450 = vpop.f32.mrb[0].mxu0
    %v451 = vadd.f32 %v363, %v450
    %v452 = vpop.f32.mrb[0].mxu0
    %453 = vmatprep.mubr.bf16.mxu0 0
    %454 = vmatmul.mubr.bf16.gmra.mrb[0].mxu0 %v335
    %v455 = vpop.f32.mrb[0].mxu0
    %v456 = vadd.f32 %v363, %v455
    %v457 = vpop.f32.mrb[0].mxu0
    %v458 = vpop.f32.mrb[0].mxu0
    %v459 = vadd.f32 %v363, %v458
    %v460 = vpop.f32.mrb[0].mxu0
    %461 = vmatprep.mubr.bf16.mxu0 0
    %462 = vmatmul.mubr.bf16.gmra.mrb[0].mxu0 %v336
    %v463 = vpop.f32.mrb[0].mxu0
    %v464 = vadd.f32 %v363, %v463
    %v465 = vpop.f32.mrb[0].mxu0
    %v466 = vpop.f32.mrb[0].mxu0
    %v467 = vadd.f32 %v363, %v466
    %v468 = vpop.f32.mrb[0].mxu0
    %469 = vmatprep.mubr.bf16.mxu0 0
    %470 = vmatmul.mubr.bf16.gmra.mrb[0].mxu0 %v337
    %v471 = vpop.f32.mrb[0].mxu0
    %v472 = vadd.f32 %v363, %v471
    %v473 = vpop.f32.mrb[0].mxu0
    %v474 = vpop.f32.mrb[0].mxu0
    %v475 = vadd.f32 %v363, %v474
    %v476 = vpop.f32.mrb[0].mxu0
    %477 = vmatprep.mubr.bf16.mxu0 0
    %478 = vmatmul.mubr.bf16.gmra.mrb[0].mxu0 %v338
    %v479 = vpop.f32.mrb[0].mxu0
    %v480 = vadd.f32 %v363, %v479
    %v481 = vpop.f32.mrb[0].mxu0
    %v482 = vpop.f32.mrb[0].mxu0
    %v483 = vadd.f32 %v363, %v482
    %v484 = vpop.f32.mrb[0].mxu0
    %485 = vmatprep.mubr.bf16.mxu0 0
    %486 = vmatmul.mubr.bf16.gmra.mrb[0].mxu0 %v339
    %v487 = vpop.f32.mrb[0].mxu0
    %v488 = vadd.f32 %v363, %v487
    %v489 = vpop.f32.mrb[0].mxu0
    %v490 = vpop.f32.mrb[0].mxu0
    %v491 = vadd.f32 %v363, %v490
    %v492 = vpop.f32.mrb[0].mxu0
    %493 = vmatprep.mubr.bf16.mxu0 0
    %494 = vmatmul.mubr.bf16.gmra.mrb[0].mxu0 %v340
    %v495 = vpop.f32.mrb[0].mxu0
    %v496 = vadd.f32 %v363, %v495
    %v497 = vpop.f32.mrb[0].mxu0
    %v498 = vpop.f32.mrb[0].mxu0
    %v499 = vadd.f32 %v363, %v498
    %v500 = vpop.f32.mrb[0].mxu0
    %501 = vmatprep.mubr.bf16.mxu0 0
    %502 = vmatmul.mubr.bf16.gmra.mrb[0].mxu0 %v341
    %v503 = vpop.f32.mrb[0].mxu0
    %v504 = vadd.f32 %v363, %v503
    %v505 = vpop.f32.mrb[0].mxu0
    %v506 = vpop.f32.mrb[0].mxu0
    %v507 = vadd.f32 %v363, %v506
    %v508 = vpop.f32.mrb[0].mxu0
    %509 = vdwg.mxu0
    %v510 = vld [vmem:[%s6] sm:$0x1]
    %v512 = vlaneseq
    %v513 = vshrl.u32 %v512, 7
    %v514 = vsub.s32 0, %v513
    %v515 = vrot.slane %v510, %v514
    %v517 = vmul.f32 %v129, %v515
    %v518 = vmul.f32 %v134, %v515
    %v519 = vmul.f32 %v139, %v515
    %v520 = vmul.f32 %v144, %v515
    %v521 = vmul.f32 %v149, %v515
    %v522 = vmul.f32 %v154, %v515
    %v523 = vmul.f32 %v159, %v515
    %v524 = vmul.f32 %v164, %v515
    %v525 = vmul.f32 %v169, %v515
    %v526 = vmul.f32 %v174, %v515
    %v527 = vmul.f32 %v179, %v515
    %v528 = vmul.f32 %v184, %v515
    %v529 = vmul.f32 %v189, %v515
    %v530 = vmul.f32 %v194, %v515
    %v531 = vmul.f32 %v199, %v515
    %v532 = vmul.f32 %v204, %v515
    %v533 = vadd.f32 %v448, %v517
    %v534 = vadd.f32 %v451, %v518
    %v535 = vadd.f32 %v456, %v519
    %v536 = vadd.f32 %v459, %v520
    %v537 = vadd.f32 %v464, %v521
    %v538 = vadd.f32 %v467, %v522
    %v539 = vadd.f32 %v472, %v523
    %v540 = vadd.f32 %v475, %v524
    %v541 = vadd.f32 %v480, %v525
    %v542 = vadd.f32 %v483, %v526
    %v543 = vadd.f32 %v488, %v527
    %v544 = vadd.f32 %v491, %v528
    %v545 = vadd.f32 %v496, %v529
    %v546 = vadd.f32 %v499, %v530
    %v547 = vadd.f32 %v504, %v531
    %v548 = vadd.f32 %v507, %v532
    %v549 = vtanh.pop %v533
    %v550 = vtanh.pop %v534
    %v551 = vtanh.pop %v535
    %v552 = vtanh.pop %v536
    %v553 = vtanh.pop %v537
    %v554 = vtanh.pop %v538
    %v555 = vtanh.pop %v539
    %v556 = vtanh.pop %v540
    %v557 = vtanh.pop %v541
    %v558 = vtanh.pop %v542
    %v559 = vtanh.pop %v543
    %v560 = vtanh.pop %v544
    %v561 = vtanh.pop %v545
    %v562 = vtanh.pop %v546
    %v563 = vtanh.pop %v547
    %v564 = vtanh.pop %v548
    %v565 = vpack.c.bf16 %v550, %v549
    %v566 = vpack.c.bf16 %v552, %v551
    %v567 = vpack.c.bf16 %v554, %v553
    %v568 = vpack.c.bf16 %v556, %v555
    %v569 = vpack.c.bf16 %v558, %v557
    %v570 = vpack.c.bf16 %v560, %v559
    %v571 = vpack.c.bf16 %v562, %v561
    %v572 = vpack.c.bf16 %v564, %v563
    %v573 = vld [vmem:[#allocation5] sm:$0xf]
    %v574 = vld [vmem:[#allocation5 + $0x4] sm:$0xf]
    %v575 = vld [vmem:[#allocation5 + $0x8] sm:$0xf]
    %v576 = vld [vmem:[#allocation5 + $0xc] sm:$0xf]
    %v577 = vld [vmem:[#allocation5 + $0x10] sm:$0xf]
    %v578 = vld [vmem:[#allocation5 + $0x14] sm:$0xf]
    %v579 = vld [vmem:[#allocation5 + $0x18] sm:$0xf]
    %v580 = vld [vmem:[#allocation5 + $0x1c] sm:$0xf]
    %v581 = vld [vmem:[#allocation5 + $0x20] sm:$0xf]
    %v582 = vld [vmem:[#allocation5 + $0x24] sm:$0xf]
    %v583 = vld [vmem:[#allocation5 + $0x28] sm:$0xf]
    %v584 = vld [vmem:[#allocation5 + $0x2c] sm:$0xf]
    %v585 = vld [vmem:[#allocation5 + $0x30] sm:$0xf]
    %v586 = vld [vmem:[#allocation5 + $0x34] sm:$0xf]
    %v587 = vld [vmem:[#allocation5 + $0x38] sm:$0xf]
    %v588 = vld [vmem:[#allocation5 + $0x3c] sm:$0xf]
    %v589 = vld [vmem:[%s8] sm:$0x1]
    %v591 = vlaneseq
    %v592 = vshrl.u32 %v591, 7
    %v593 = vsub.s32 0, %v592
    %v594 = vrot.slane %v589, %v593
    %v612 = vunpack.c.l.b16 %v573
    %v613 = vunpack.c.l.b16 %v574
    %v614 = vunpack.c.l.b16 %v575
    %v615 = vunpack.c.l.b16 %v576
    %v616 = vunpack.c.l.b16 %v577
    %v617 = vunpack.c.l.b16 %v578
    %v618 = vunpack.c.l.b16 %v579
    %v619 = vunpack.c.l.b16 %v580
    %v620 = vunpack.c.l.b16 %v581
    %v621 = vunpack.c.l.b16 %v582
    %v622 = vunpack.c.l.b16 %v583
    %v623 = vunpack.c.l.b16 %v584
    %v624 = vunpack.c.l.b16 %v585
    %v625 = vunpack.c.l.b16 %v586
    %v626 = vunpack.c.l.b16 %v587
    %v627 = vunpack.c.l.b16 %v588
    %v628 = vpack.c.b16 %v613, %v612
    %v629 = vpack.c.b16 %v615, %v614
    %v630 = vpack.c.b16 %v617, %v616
    %v631 = vpack.c.b16 %v619, %v618
    %v632 = vpack.c.b16 %v621, %v620
    %v633 = vpack.c.b16 %v623, %v622
    %v634 = vpack.c.b16 %v625, %v624
    %v635 = vpack.c.b16 %v627, %v626
    %644 = vmatprep.subr.bf16.mxu0 0
    %645 = vmatpush1.bf16.msra.mxu0 %v628
    %646 = vmatprep.subr.bf16.mxu0 0
    %647 = vmatpush1.bf16.msra.mxu0 %v629
    %648 = vmatprep.subr.bf16.mxu0 0
    %649 = vmatpush1.bf16.msra.mxu0 %v630
    %650 = vmatprep.subr.bf16.mxu0 0
    %651 = vmatpush1.bf16.msra.mxu0 %v631
    %652 = vmatprep.subr.bf16.mxu0 0
    %653 = vmatpush1.bf16.msra.mxu0 %v632
    %654 = vmatprep.subr.bf16.mxu0 0
    %655 = vmatpush1.bf16.msra.mxu0 %v633
    %656 = vmatprep.subr.bf16.mxu0 0
    %657 = vmatpush1.bf16.msra.mxu0 %v634
    %658 = vmatprep.subr.bf16.mxu0 0
    %659 = vmatpush1.bf16.msra.mxu0 %v635
    %660 = vmatprep.subr.bf16.mxu0 0
    %661 = vmatpush1.bf16.msra.mxu0 0
    %662 = vmatprep.subr.bf16.mxu0 0
    %663 = vmatpush1.bf16.msra.mxu0 0
    %664 = vmatprep.subr.bf16.mxu0 0
    %665 = vmatpush1.bf16.msra.mxu0 0
    %666 = vmatprep.subr.bf16.mxu0 0
    %667 = vmatpush1.bf16.msra.mxu0 0
    %668 = vmatprep.subr.bf16.mxu0 0
    %669 = vmatpush1.bf16.msra.mxu0 0
    %670 = vmatprep.subr.bf16.mxu0 0
    %671 = vmatpush1.bf16.msra.mxu0 0
    %672 = vmatprep.subr.bf16.mxu0 0
    %673 = vmatpush1.bf16.msra.mxu0 0
    %674 = vmatprep.subr.bf16.mxu0 0
    %675 = vmatpush1.bf16.msra.mxu0 0
    %676 = vmatprep.mubr.bf16.mxu0 0
    %677 = vmatmul.mubr.bf16.gmra.mrb[0].mxu0 %v565
    %v678 = vpop.f32.mrb[0].mxu0
    %v679 = vadd.f32 %v594, %v678
    %v680 = vpop.f32.mrb[0].mxu0
    %v681 = vpop.f32.mrb[0].mxu0
    %v682 = vadd.f32 %v594, %v681
    %v683 = vpop.f32.mrb[0].mxu0
    %684 = vmatprep.mubr.bf16.mxu0 0
    %685 = vmatmul.mubr.bf16.gmra.mrb[0].mxu0 %v566
    %v686 = vpop.f32.mrb[0].mxu0
    %v687 = vadd.f32 %v594, %v686
    %v688 = vpop.f32.mrb[0].mxu0
    %v689 = vpop.f32.mrb[0].mxu0
    %v690 = vadd.f32 %v594, %v689
    %v691 = vpop.f32.mrb[0].mxu0
    %692 = vmatprep.mubr.bf16.mxu0 0
    %693 = vmatmul.mubr.bf16.gmra.mrb[0].mxu0 %v567
    %v694 = vpop.f32.mrb[0].mxu0
    %v695 = vadd.f32 %v594, %v694
    %v696 = vpop.f32.mrb[0].mxu0
    %v697 = vpop.f32.mrb[0].mxu0
    %v698 = vadd.f32 %v594, %v697
    %v699 = vpop.f32.mrb[0].mxu0
    %700 = vmatprep.mubr.bf16.mxu0 0
    %701 = vmatmul.mubr.bf16.gmra.mrb[0].mxu0 %v568
    %v702 = vpop.f32.mrb[0].mxu0
    %v703 = vadd.f32 %v594, %v702
    %v704 = vpop.f32.mrb[0].mxu0
    %v705 = vpop.f32.mrb[0].mxu0
    %v706 = vadd.f32 %v594, %v705
    %v707 = vpop.f32.mrb[0].mxu0
    %708 = vmatprep.mubr.bf16.mxu0 0
    %709 = vmatmul.mubr.bf16.gmra.mrb[0].mxu0 %v569
    %v710 = vpop.f32.mrb[0].mxu0
    %v711 = vadd.f32 %v594, %v710
    %v712 = vpop.f32.mrb[0].mxu0
    %v713 = vpop.f32.mrb[0].mxu0
    %v714 = vadd.f32 %v594, %v713
    %v715 = vpop.f32.mrb[0].mxu0
    %716 = vmatprep.mubr.bf16.mxu0 0
    %717 = vmatmul.mubr.bf16.gmra.mrb[0].mxu0 %v570
    %v718 = vpop.f32.mrb[0].mxu0
    %v719 = vadd.f32 %v594, %v718
    %v720 = vpop.f32.mrb[0].mxu0
    %v721 = vpop.f32.mrb[0].mxu0
    %v722 = vadd.f32 %v594, %v721
    %v723 = vpop.f32.mrb[0].mxu0
    %724 = vmatprep.mubr.bf16.mxu0 0
    %725 = vmatmul.mubr.bf16.gmra.mrb[0].mxu0 %v571
    %v726 = vpop.f32.mrb[0].mxu0
    %v727 = vadd.f32 %v594, %v726
    %v728 = vpop.f32.mrb[0].mxu0
    %v729 = vpop.f32.mrb[0].mxu0
    %v730 = vadd.f32 %v594, %v729
    %v731 = vpop.f32.mrb[0].mxu0
    %732 = vmatprep.mubr.bf16.mxu0 0
    %733 = vmatmul.mubr.bf16.gmra.mrb[0].mxu0 %v572
    %v734 = vpop.f32.mrb[0].mxu0
    %v735 = vadd.f32 %v594, %v734
    %v736 = vpop.f32.mrb[0].mxu0
    %v737 = vpop.f32.mrb[0].mxu0
    %v738 = vadd.f32 %v594, %v737
    %v739 = vpop.f32.mrb[0].mxu0
    %740 = vdwg.mxu0
    %v741 = vsub.f32 %v110, %v679
    %v742 = vsub.f32 %v111, %v682
    %v743 = vsub.f32 %v112, %v687
    %v744 = vsub.f32 %v113, %v690
    %v745 = vsub.f32 %v114, %v695
    %v746 = vsub.f32 %v115, %v698
    %v747 = vsub.f32 %v116, %v703
    %v748 = vsub.f32 %v117, %v706
    %v749 = vsub.f32 %v118, %v711
    %v750 = vsub.f32 %v119, %v714
    %v751 = vsub.f32 %v120, %v719
    %v752 = vsub.f32 %v121, %v722
    %v753 = vsub.f32 %v122, %v727
    %v754 = vsub.f32 %v123, %v730
    %v755 = vsub.f32 %v124, %v735
    %v756 = vsub.f32 %v125, %v738
    %v757 = vand.u32 2147483647, %v741
    %v758 = vand.u32 2147483647, %v742
    %v759 = vand.u32 2147483647, %v743
    %v760 = vand.u32 2147483647, %v744
    %v761 = vand.u32 2147483647, %v745
    %v762 = vand.u32 2147483647, %v746
    %v763 = vand.u32 2147483647, %v747
    %v764 = vand.u32 2147483647, %v748
    %v765 = vand.u32 2147483647, %v749
    %v766 = vand.u32 2147483647, %v750
    %v767 = vand.u32 2147483647, %v751
    %v768 = vand.u32 2147483647, %v752
    %v769 = vand.u32 2147483647, %v753
    %v770 = vand.u32 2147483647, %v754
    %v771 = vand.u32 2147483647, %v755
    %v772 = vand.u32 2147483647, %v756
    %v773 = vadd.f32 %v757, %v758
    %v774 = vadd.f32 %v773, %v759
    %v775 = vadd.f32 %v774, %v760
    %v776 = vadd.f32 %v775, %v761
    %v777 = vadd.f32 %v776, %v762
    %v778 = vadd.f32 %v777, %v763
    %v779 = vadd.f32 %v778, %v764
    %v780 = vadd.f32 %v779, %v765
    %v781 = vadd.f32 %v780, %v766
    %v782 = vadd.f32 %v781, %v767
    %v783 = vadd.f32 %v782, %v768
    %v784 = vadd.f32 %v783, %v769
    %v785 = vadd.f32 %v784, %v770
    %v786 = vadd.f32 %v785, %v771
    %v787 = vadd.f32 %v786, %v772
    %788 = vst [vmem:[#allocation7] sm:$0xff] %v787
    // Predicated region
    $region46: #{tpu_custom_call.1} parent=1 // pred_check
      _
    $region47: #{tpu_custom_call.1} parent=1 // pred_check_branch
      %790 = sbr.rel (0) target = $region49
    $region48: #{tpu_custom_call.1} parent=1 // pred_region
      %s792 = ssub.s32 128, 128
      %793 = vsyncadd [#allocation4], %s792
      %s795 = sshll.u32 [#allocation7], 4
      %s796 = int_to_ptr.vmem [resolvable:$true] %s795
      %798 = dma.vmem_to_hbm [thread:$0]  %s796, 128, %s9, [#allocation4]
    $region49: #{tpu_custom_call.1} parent=1 // pred_fallthru
      _
    // Predicated region
    $region50: #{tpu_custom_call.1} parent=1 // pred_check
      _
    $region51: #{tpu_custom_call.1} parent=1 // pred_check_branch
      %800 = sbr.rel (0) target = $region53
    $region52: #{tpu_custom_call.1} parent=1 // pred_region
      %801 = dma.done [#allocation4], 128
    $region53: #{tpu_custom_call.1} parent=1 // pred_fallthru
      _
    %802 = vsyncpa [#allocation3], 1
    %803 = vsyncpa [#allocation6], 1
    %804 = vsyncpa [#allocation4], 1

</llo_original>
